<compile_context>
chip_gen: v7x
topology: tpu7x:2x2x1
jax: 0.10.0
libtpu: 0.0.40
codegen_flags: <defaults>
</compile_context>

<pallas_src>
import math

import jax
import jax.numpy as jnp
from jax.experimental import pallas as pl
from jax.experimental.pallas import tpu as pltpu

_MIB = 1024 * 1024


def _cdiv(a: int, b: int) -> int:
    return -(-a // b)


def _round_up(a: int, b: int) -> int:
    return _cdiv(a, b) * b


def _sublane_align(itemsize: int) -> int:
    """Native sublane packing (rows per packed vreg group) for the dtype."""
    if itemsize >= 4:
        return 8
    if itemsize == 2:
        return 16
    return 32


def _vmem_budgets() -> tuple:
    """(double-buffered input-tile budget, vmem_limit_bytes), per chip gen."""
    try:
        vmem_cap = int(pltpu.get_tpu_info().vmem_capacity_bytes)
    except Exception:
        vmem_cap = None
    if vmem_cap is not None and vmem_cap > 64 * _MIB:
        # v5e / v6e class: 128 MiB physical VMEM -> bigger streaming tiles.
        return 40 * _MIB, 96 * _MIB
    # v7x class (64 MiB physical) or unknown: conservative but still large.
    return 28 * _MIB, 56 * _MIB


def _pick_batch_tile(B: int, Fp: int, itemsize: int, node_align: int,
                     input_budget: int) -> int:
    """Batch tile: multiple of 8 (or the full B), small enough that even the
    minimal node tile stays in budget, preferring an even number of roughly
    balanced batch steps so both v7x TensorCores stream."""
    if B <= 8:
        return B  # tiny batch: single step (accept single-core execution)
    cap = input_budget // (2 * node_align * Fp * itemsize)
    cap = max(8, min((cap // 8) * 8, 256, (B // 8) * 8))
    steps = 2
    while steps <= 2 * _cdiv(B, 8):
        tb = _round_up(_cdiv(B, steps), 8)
        if tb <= cap and _cdiv(B, tb) % 2 == 0:
            return tb
        steps += 2
    return cap


def _pick_node_tile(Np: int, tb: int, Fp: int, itemsize: int, node_align: int,
                    input_budget: int) -> int:
    """Node (reduction) tile: full extent if it fits the budget, else the
    largest sublane-packing-aligned tile whose double-buffered input fits
    (floored at one packed sublane group, the minimum legal tile)."""
    cap = input_budget // (2 * tb * Fp * itemsize)
    if Np <= cap:
        return Np  # single reduction step, no tail mask needed
    tn = max(node_align, (cap // node_align) * node_align)
    if tn >= Np:
        return Np
    return tn


def _make_mean_pool_kernel(inv_n: float, n_total: int, tn: int, has_tail: bool):
    def kernel(x_ref, o_ref):
        # x_ref: (tb, tn, Fp) input tile, o_ref: (tb, Fp) f32 resident output.
        n_idx = pl.program_id(1)
        n_last = pl.num_programs(1) - 1

        @pl.when(n_idx == 0)
        def _init():
            o_ref[...] = jnp.zeros_like(o_ref)

        def _accumulate(x):
            # Cross-sublane reduce over the node-tile axis, f32 accumulate.
            o_ref[...] += jnp.sum(x.astype(jnp.float32), axis=1)

        if has_tail:
            @pl.when(n_idx != n_last)
            def _body():
                _accumulate(x_ref[...])

            @pl.when(n_idx == n_last)
            def _tail():
                # Zero out padded (out-of-range) node rows in the final step.
                x = x_ref[...]
                rows = jax.lax.broadcasted_iota(jnp.int32, x.shape, 1)
                remaining = n_total - n_idx * tn
                _accumulate(jnp.where(rows < remaining, x, jnp.zeros_like(x)))
        else:
            _accumulate(x_ref[...])

        @pl.when(n_idx == n_last)
        def _finalize():
            o_ref[...] = o_ref[...] * inv_n

    return kernel


def pooling_layer(node_fea: jax.Array) -> jax.Array:
    """Mean over the node dimension (dim=1): (B, N, F) -> (B, F)."""
    B, N, F = node_fea.shape
    out_dtype = node_fea.dtype
    itemsize = jnp.dtype(node_fea.dtype).itemsize
    node_align = _sublane_align(itemsize)
    input_budget, vmem_limit = _vmem_budgets()

    # ---- lane folding: make the feature width a multiple of 128 lanes -------
    k = 1
    if F % 128 != 0:
        k0 = 128 // math.gcd(F, 128)  # smallest k with (k * F) % 128 == 0
        if k0 > 1 and N % k0 == 0:
            k = k0
    x = node_fea.reshape(B, N // k, k * F) if k > 1 else node_fea
    Np, Fp = x.shape[1], x.shape[2]

    # ---- VMEM-safe, divisor-free tiling --------------------------------------
    tb = _pick_batch_tile(B, Fp, itemsize, node_align, input_budget)
    tn = _pick_node_tile(Np, tb, Fp, itemsize, node_align, input_budget)
    has_tail = (Np % tn) != 0
    grid = (_cdiv(B, tb), _cdiv(Np, tn))  # node (reduction) axis last

    kernel = _make_mean_pool_kernel(1.0 / N, Np, tn, has_tail)

    out_f32 = pl.pallas_call(
        kernel,
        out_shape=jax.ShapeDtypeStruct((B, Fp), jnp.float32),
        grid_spec=pltpu.PrefetchScalarGridSpec(
            num_scalar_prefetch=0,
            grid=grid,
            in_specs=[pl.BlockSpec((tb, tn, Fp), lambda b, n: (b, n, 0))],
            out_specs=pl.BlockSpec((tb, Fp), lambda b, n: (b, 0)),
        ),
        compiler_params=pltpu.CompilerParams(
            dimension_semantics=("parallel", "arbitrary"),
            vmem_limit_bytes=vmem_limit,
        ),
        cost_estimate=pl.CostEstimate(
            flops=B * N * F,
            transcendentals=0,
            bytes_accessed=B * N * F * itemsize + B * Fp * 4,
        ),
    )(x)

    if k > 1:
        # Tiny final fold over the k lane groups (B x k x F elements).
        out = jnp.sum(out_f32.reshape(B, k, F), axis=1)
    else:
        out = out_f32
    return out.astype(out_dtype)


if __name__ == "__main__":
    key = jax.random.PRNGKey(0)
    B, N, F = 2, 8, 32          # batch, nodes per graph, node-feature length
    node_fea = jax.random.normal(key, (B, N, F), dtype=jnp.float32)

    out = jax.block_until_ready(pooling_layer(node_fea))

    # correctness check against plain-JAX reference (== torch .mean(dim=1))
    ref = jnp.mean(node_fea, axis=1)
    assert out.shape == (B, F)
    assert jnp.allclose(out, ref, atol=1e-5, rtol=1e-5)

    print("KERNEL_OK")
</pallas_src>

<mosaic_0001>
module attributes {stable_mosaic.version = 11 : i64} {
  func.func @kernel(%arg0: i32, %arg1: i32, %arg2: memref<2x2x128xf32, #tpu.memory_space<vmem>>, %arg3: memref<2x128xf32, #tpu.memory_space<vmem>>) attributes {dimension_semantics = [#tpu.dimension_semantics<parallel>, #tpu.dimension_semantics<arbitrary>], iteration_bounds = array<i64: 1, 1>, scalar_prefetch = 0 : i64, scratch_operands = 0 : i64, tpu.core_type = #tpu.core_type<tc>, window_params = [{transform_indices = @transform_0, window_bounds = array<i64: 2, 2, 128>}, {transform_indices = @transform_1, window_bounds = array<i64: 2, 128>}]} {
    %c0_i32 = arith.constant 0 : i32
    %0 = arith.cmpi eq, %arg1, %c0_i32 : i32
    %1 = arith.extui %0 : i1 to i32
    %c0_i32_0 = arith.constant 0 : i32
    %2 = arith.cmpi ne, %1, %c0_i32_0 : i32
    scf.if %2 {
      %cst_9 = arith.constant 0.000000e+00 : f32
      %11 = vector.broadcast %cst_9 : f32 to vector<2x128xf32>
      %c0_10 = arith.constant 0 : index
      %c0_11 = arith.constant 0 : index
      %12 = vector.load %arg3[%c0_10, %c0_11] : memref<2x128xf32, #tpu.memory_space<vmem>>, vector<2x128xf32>
      tpu.vector_store %arg3[%c0_10, %c0_11], %11 {strides = array<i32>} : memref<2x128xf32, #tpu.memory_space<vmem>>, vector<2x128xf32>,
    } else {
    }
    %c0 = arith.constant 0 : index
    %c0_1 = arith.constant 0 : index
    %c0_2 = arith.constant 0 : index
    %3 = vector.load %arg2[%c0, %c0_1, %c0_2] : memref<2x2x128xf32, #tpu.memory_space<vmem>>, vector<2x2x128xf32>
    %c0_3 = arith.constant 0 : index
    %c0_4 = arith.constant 0 : index
    %4 = vector.load %arg3[%c0_3, %c0_4] : memref<2x128xf32, #tpu.memory_space<vmem>>, vector<2x128xf32>
    %cst = arith.constant dense<0.000000e+00> : vector<2x128xf32>
    %5 = vector.multi_reduction <add>, %3, %cst [1] : vector<2x2x128xf32> to vector<2x128xf32>
    %6 = arith.addf %4, %5 : vector<2x128xf32>
    %c0_5 = arith.constant 0 : index
    %c0_6 = arith.constant 0 : index
    %7 = vector.load %arg3[%c0_5, %c0_6] : memref<2x128xf32, #tpu.memory_space<vmem>>, vector<2x128xf32>
    tpu.vector_store %arg3[%c0_5, %c0_6], %6 {strides = array<i32>} : memref<2x128xf32, #tpu.memory_space<vmem>>, vector<2x128xf32>,
    %c0_i32_7 = arith.constant 0 : i32
    %8 = arith.cmpi eq, %arg1, %c0_i32_7 : i32
    %9 = arith.extui %8 : i1 to i32
    %c0_i32_8 = arith.constant 0 : i32
    %10 = arith.cmpi ne, %9, %c0_i32_8 : i32
    scf.if %10 {
      %c0_9 = arith.constant 0 : index
      %c0_10 = arith.constant 0 : index
      %11 = vector.load %arg3[%c0_9, %c0_10] : memref<2x128xf32, #tpu.memory_space<vmem>>, vector<2x128xf32>
      %cst_11 = arith.constant 1.250000e-01 : f32
      %12 = vector.broadcast %cst_11 : f32 to vector<2x128xf32>
      %13 = arith.mulf %11, %12 : vector<2x128xf32>
      %c0_12 = arith.constant 0 : index
      %c0_13 = arith.constant 0 : index
      %14 = vector.load %arg3[%c0_12, %c0_13] : memref<2x128xf32, #tpu.memory_space<vmem>>, vector<2x128xf32>
      tpu.vector_store %arg3[%c0_12, %c0_13], %13 {strides = array<i32>} : memref<2x128xf32, #tpu.memory_space<vmem>>, vector<2x128xf32>,
    } else {
    }
    return
  }
  func.func @transform_0(%arg0: i32, %arg1: i32) -> (i32, i32, i32) {
    %c0_i32 = arith.constant 0 : i32
    %c0_i32_0 = arith.constant 0 : i32
    return %arg0, %arg1, %c0_i32 : i32, i32, i32
  }
  func.func @transform_1(%arg0: i32, %arg1: i32) -> (i32, i32) {
    %c0_i32 = arith.constant 0 : i32
    %c0_i32_0 = arith.constant 0 : i32
    return %arg0, %c0_i32 : i32, i32
  }
}

</mosaic_0001>

<llo_original>
// kernel: tpu_custom_call.1
$region0: #{tpu_custom_call.1}
  #allocation0 [shape = 'u32[]', space=smem, size = 0x4, offset = 0x4, fixed_abs, tag = 'smem constant byte address 0x4 - core index']
  #allocation1 [shape = 'u32[144,128]{1,0:T(1,128)}', space=vmem, size = 0x12000, scoped, tag = 'internal scratch']
  %s0 = inlined_call_operand.hbm [shape: f32[2,2,128], index: 0, kind: input, shape index: {}]
  %s1 = inlined_call_operand.hbm [shape: f32[2,128], index: 1, kind: output, shape index: {}]
  %s2 = sld [smem:[#allocation0]]
  $region26: #{tpu_custom_call.1} parent=0
    _
  %s4 = ssub.s32 1, %s2
  %s5 = scalar_select 0, %s4, %s2
  $region1: #{tpu_custom_call.1} parent=0
    #allocation2 [shape = 'u8[2048]{0}', space=vmem, size = 0x800, scoped, tag = 'input window, operand 0, single buffered']
    #allocation3 [shape = 's32[1]{0}', space=sflag, size = 0x4, scoped, tag = 'scoped memory for tpu_custom_call.1']
    #allocation4 [shape = 's32[1]{0}', space=sflag, size = 0x4, scoped, tag = 'scoped memory for tpu_custom_call.1']
    #allocation5 [shape = 'u8[1024]{0}', space=vmem, size = 0x400, scoped, tag = 'output window, operand 0, single buffered']
    %6 = vsyncpa [#allocation3], 0
    %7 = vsyncpa [#allocation4], 0
    // Predicated region
    $region2: #{tpu_custom_call.1} parent=1 // pred_check
      _
    $region3: #{tpu_custom_call.1} parent=1 // pred_check_branch
      %9 = sbr.rel (0) target = $region5
    $region4: #{tpu_custom_call.1} parent=1 // pred_region
      %s11 = ssub.s32 64, 64
      %12 = vsyncadd [#allocation3], %s11
      %s13 = sshll.u32 [#allocation2], 4
      %s14 = int_to_ptr.vmem [resolvable:$true] %s13
      %19 = dma.hbm_to_vmem [thread:$0]  %s0, 64, %s14, [#allocation3], 32, 32, 2
    $region5: #{tpu_custom_call.1} parent=1 // pred_fallthru
      _
    // Predicated region
    $region6: #{tpu_custom_call.1} parent=1 // pred_check
      _
    $region7: #{tpu_custom_call.1} parent=1 // pred_check_branch
      %21 = sbr.rel (0) target = $region9
    $region8: #{tpu_custom_call.1} parent=1 // pred_region
      %22 = dma.done [#allocation3], 64
    $region9: #{tpu_custom_call.1} parent=1 // pred_fallthru
      _
    %p23 = scmp.eq.s32.totalorder 0, 0
    // Predicated region
    $region10: #{tpu_custom_call.1} parent=1 // pred_check
      %p24 = pneg %p23
    $region11: #{tpu_custom_call.1} parent=1 // pred_check_branch
      %26 = sbr.rel (%p24) target = $region13
    $region12: #{tpu_custom_call.1} parent=1 // pred_region
      %27 = vst [vmem:[#allocation5] sm:$0x3] 0.0
    $region13: #{tpu_custom_call.1} parent=1 // pred_fallthru
      _
    %v28 = vld [vmem:[#allocation2] sm:$0x3]
    %v29 = vld [vmem:[#allocation2 + $0x2] sm:$0x3]
    %v30 = vld [vmem:[#allocation5] sm:$0x3]
    %vm31 = vcmask 1041408
    %v32 = vsel %vm31, %v28, 0.0
    %v33 = vrot.slane %v32, 4
    %v34 = vadd.f32 %v32, %v33
    %v35 = vrot.slane %v34, 2
    %v36 = vadd.f32 %v34, %v35
    %v37 = vrot.slane %v36, 1
    %v38 = vadd.f32 %v36, %v37
    %v39 = vsel %vm31, %v29, 0.0
    %v40 = vrot.slane %v39, 4
    %v41 = vadd.f32 %v39, %v40
    %v42 = vrot.slane %v41, 2
    %v43 = vadd.f32 %v41, %v42
    %v44 = vrot.slane %v43, 1
    %v45 = vadd.f32 %v43, %v44
    %vm48 = vcmask 1041409
    %v49 = vsel %vm48, %v45, %v38
    %v51 = vadd.f32 %v30, %v49
    %52 = vst [vmem:[#allocation5] sm:$0x3] %v51
    // Predicated region
    $region14: #{tpu_custom_call.1} parent=1 // pred_check
      %p53 = pneg %p23
    $region15: #{tpu_custom_call.1} parent=1 // pred_check_branch
      %55 = sbr.rel (%p53) target = $region17
    $region16: #{tpu_custom_call.1} parent=1 // pred_region
      %v56 = vld [vmem:[#allocation5] sm:$0x3]
      %v57 = vmul.f32 %v56, 0.125
      %58 = vst [vmem:[#allocation5] sm:$0x3] %v57
    $region17: #{tpu_custom_call.1} parent=1 // pred_fallthru
      _
    // Predicated region
    $region18: #{tpu_custom_call.1} parent=1 // pred_check
      _
    $region19: #{tpu_custom_call.1} parent=1 // pred_check_branch
      %60 = sbr.rel (0) target = $region21
    $region20: #{tpu_custom_call.1} parent=1 // pred_region
      %s62 = ssub.s32 32, 32
      %63 = vsyncadd [#allocation4], %s62
      %s65 = sshll.u32 [#allocation5], 4
      %s66 = int_to_ptr.vmem [resolvable:$true] %s65
      %68 = dma.vmem_to_hbm [thread:$0]  %s66, 32, %s1, [#allocation4]
    $region21: #{tpu_custom_call.1} parent=1 // pred_fallthru
      _
    // Predicated region
    $region22: #{tpu_custom_call.1} parent=1 // pred_check
      _
    $region23: #{tpu_custom_call.1} parent=1 // pred_check_branch
      %70 = sbr.rel (0) target = $region25
    $region24: #{tpu_custom_call.1} parent=1 // pred_region
      %71 = dma.done [#allocation4], 32
    $region25: #{tpu_custom_call.1} parent=1 // pred_fallthru
      _
    %72 = vsyncpa [#allocation3], 1
    %73 = vsyncpa [#allocation4], 1

</llo_original>
